<compile_context>
chip_gen: v5e
topology: v5e:2x2
jax: 0.10.0
libtpu: 0.0.40
codegen_flags: <defaults>
</compile_context>

<pallas_src>
import jax
import jax.numpy as jnp
from jax import lax
from jax.experimental import pallas as pl
from jax.experimental.pallas import tpu as pltpu


def _round_up(x, m):
    return ((x + m - 1) // m) * m


def _sublane_multiple(dtype):
    # 8 rows/vreg at 32-bit, 16 at 16-bit, 32 at 8-bit.
    return max(8, (8 * 4) // jnp.dtype(dtype).itemsize)


def _linear_bias_kernel(x_ref, wt_ref, b_ref, o_ref, acc_ref):
    """One (tm, tn) output tile, accumulated over the K (C_in) grid axis.

    x_ref:   (tm, tk)  token tile, compute dtype
    wt_ref:  (tk, tn)  pre-transposed (C_in, C_out) weight tile, compute dtype
    b_ref:   (1,  tn)  bias tile, fp32
    o_ref:   (tm, tn)  output tile (x.dtype), lane-dense on C_out
    acc_ref: (tm, tn)  fp32 accumulator scratch
    """
    k = pl.program_id(2)

    @pl.when(k == 0)
    def _():
        acc_ref[...] = jnp.zeros_like(acc_ref)

    acc_ref[...] += lax.dot_general(
        x_ref[...], wt_ref[...],
        dimension_numbers=(((1,), (0,)), ((), ())),   # (tm,tk) @ (tk,tn)
        preferred_element_type=jnp.float32)

    @pl.when(k == pl.num_programs(2) - 1)
    def _():
        o_ref[...] = (acc_ref[...] + b_ref[...]).astype(o_ref.dtype)


def prepare_stitching_params(weight, bias, lora_A=None, lora_B=None,
                             lora_alpha=1, compute_dtype=jnp.bfloat16):
    """One-time weight prep (weights and LoRA factors are frozen).

    Folds the LoRA delta into the frozen weight (equivalent to the un-merged
    two-matmul forward with no dropout), casts to compute_dtype, zero-pads
    C_in/C_out to multiples of 128 and pre-transposes to (C_in_p, C_out_p).
    Call this ONCE per layer and reuse the result across forward calls.
    """
    C_out, C_in = weight.shape
    w = weight.astype(jnp.float32)
    if lora_A is not None and lora_A.shape[0] > 0:
        scaling = float(lora_alpha) / float(lora_A.shape[0])
        w = w + (lora_B.astype(jnp.float32) @ lora_A.astype(jnp.float32)) * scaling

    Cin_p = _round_up(C_in, 128)
    Cout_p = _round_up(C_out, 128)
    wt_p = jnp.pad(w.T, ((0, Cin_p - C_in), (0, Cout_p - C_out))).astype(compute_dtype)
    b_p = jnp.pad(bias.astype(jnp.float32), (0, Cout_p - C_out)).reshape(1, Cout_p)
    return {"wt_p": wt_p, "b_p": b_p, "C_in": C_in, "C_out": C_out,
            "compute_dtype": jnp.dtype(compute_dtype)}


def stitching_layer_fwd(x, params, *, tm=None, tn=None, tk=None,
                        vmem_limit_bytes=48 * 1024 * 1024):
    """Per-call forward: only x is cast/padded; the weight is already prepared."""
    B, N, C_in = x.shape
    assert C_in == params["C_in"], "x feature dim does not match prepared weight"
    C_out = params["C_out"]
    wt_p, b_p = params["wt_p"], params["b_p"]
    cdt = params["compute_dtype"]
    Cin_p, Cout_p = wt_p.shape
    M = B * N

    # ---- tile selection -------------------------------------------------
    sub = _sublane_multiple(cdt)
    if tm is None:
        tm = 512 if M >= 512 else _round_up(M, sub)
    tm = _round_up(tm, sub)
    if tn is None:
        tn = 128
        for cand in (512, 256):
            if Cout_p % cand == 0:
                tn = cand
                break
    if tk is None:
        if Cin_p <= 1024:
            tk = Cin_p
        else:
            tk = 128
            for cand in (1024, 512, 256):
                if Cin_p % cand == 0:
                    tk = cand
                    break
    assert tn % 128 == 0 and Cout_p % tn == 0
    assert tk % 128 == 0 and Cin_p % tk == 0

    Mp = _round_up(M, tm)
    x2d = x.reshape(M, C_in).astype(cdt)
    x_p = jnp.pad(x2d, ((0, Mp - M), (0, Cin_p - C_in)))

    Ib, Jb, Kb = Mp // tm, Cout_p // tn, Cin_p // tk

    # ---- grid order -----------------------------------------------------
    # K innermost (accumulator); lead with whichever parallel axis has more
    # blocks so both v7x TensorCores get work (Ib is often 1 at inference).
    # Total HBM traffic is symmetric in the two outer axes once K is tiled,
    # so this only affects megacore sharding, not bandwidth.
    cout_major = Jb >= Ib
    if cout_major:
        grid = (Jb, Ib, Kb)
        x_map = lambda j, i, k: (i, k)
        w_map = lambda j, i, k: (k, j)
        b_map = lambda j, i, k: (0, j)
        o_map = lambda j, i, k: (i, j)
    else:
        grid = (Ib, Jb, Kb)
        x_map = lambda i, j, k: (i, k)
        w_map = lambda i, j, k: (k, j)
        b_map = lambda i, j, k: (0, j)
        o_map = lambda i, j, k: (i, j)

    itemsize = jnp.dtype(cdt).itemsize
    cost = pl.CostEstimate(
        flops=2 * M * C_out * C_in,
        transcendentals=0,
        bytes_accessed=(M * C_in * itemsize + Cin_p * Cout_p * itemsize
                        + M * C_out * x.dtype.itemsize + int(b_p.size) * 4))

    out_p = pl.pallas_call(
        _linear_bias_kernel,
        out_shape=jax.ShapeDtypeStruct((Mp, Cout_p), x.dtype),
        grid_spec=pltpu.PrefetchScalarGridSpec(
            num_scalar_prefetch=0,
            grid=grid,
            in_specs=[
                pl.BlockSpec((tm, tk), x_map),   # x tile
                pl.BlockSpec((tk, tn), w_map),   # pre-transposed weight tile
                pl.BlockSpec((1, tn), b_map),    # bias tile (tiny, revisit-skipped over k)
            ],
            out_specs=pl.BlockSpec((tm, tn), o_map),
            scratch_shapes=[pltpu.VMEM((tm, tn), jnp.float32)],
        ),
        compiler_params=pltpu.CompilerParams(
            dimension_semantics=("parallel", "parallel", "arbitrary"),
            vmem_limit_bytes=vmem_limit_bytes),
        cost_estimate=cost,
    )(x_p, wt_p, b_p)

    return out_p[:M, :C_out].reshape(B, N, C_out)


def stitching_layer(x, weight, bias, lora_A=None, lora_B=None, lora_alpha=1,
                    compute_dtype=None, **kwargs):
    """Convenience one-shot path (prep + forward).

    For repeated calls, run prepare_stitching_params() once and reuse it with
    stitching_layer_fwd() so the weight fold/cast/pad/transpose is amortized.
    """
    if compute_dtype is None:
        compute_dtype = jnp.bfloat16 if x.dtype == jnp.float32 else x.dtype
    params = prepare_stitching_params(weight, bias, lora_A, lora_B, lora_alpha,
                                      compute_dtype=compute_dtype)
    return stitching_layer_fwd(x, params, **kwargs)


if __name__ == "__main__":
    key = jax.random.PRNGKey(0)

    # ---- test 1: small ViT-like stitching shapes, fp32 compute (tight) ----
    Bsz, seq, C_in, C_out, r, lora_alpha = 2, 8, 32, 64, 8, 1
    k_x, k_w, k_b, k_a, k_bB = jax.random.split(key, 5)
    x = jax.random.normal(k_x, (Bsz, seq, C_in), dtype=jnp.float32)
    weight = jax.random.normal(k_w, (C_out, C_in), dtype=jnp.float32) * 0.05
    bias = jax.random.normal(k_b, (C_out,), dtype=jnp.float32) * 0.01
    # NOTE: the PyTorch module zero-inits lora_B; use nonzero init to exercise
    # the LoRA path.
    lora_A = jax.random.normal(k_a, (r, C_in), dtype=jnp.float32) * 0.05
    lora_B = jax.random.normal(k_bB, (C_out, r), dtype=jnp.float32) * 0.05

    scaling = lora_alpha / r
    ref = (x @ weight.T + bias) + (x @ lora_A.T) @ lora_B.T * scaling

    params_f32 = prepare_stitching_params(weight, bias, lora_A, lora_B,
                                          lora_alpha, compute_dtype=jnp.float32)
    out = jax.block_until_ready(stitching_layer_fwd(x, params_f32))
    assert out.shape == (Bsz, seq, C_out)
    assert jnp.allclose(out, ref, atol=1e-5, rtol=1e-5), "fp32 LoRA mismatch"

    # r == 0 (plain linear) path.
    out0 = jax.block_until_ready(
        stitching_layer(x, weight, bias, compute_dtype=jnp.float32))
    ref0 = x @ weight.T + bias
    assert jnp.allclose(out0, ref0, atol=1e-5, rtol=1e-5), "fp32 r=0 mismatch"

    # default compute dtype (bf16 operands, fp32 accumulation) -- loose tol.
    out_bf16 = jax.block_until_ready(
        stitching_layer(x, weight, bias, lora_A, lora_B, lora_alpha))
    assert out_bf16.dtype == x.dtype and out_bf16.shape == (Bsz, seq, C_out)
    assert bool(jnp.all(jnp.isfinite(out_bf16)))
    assert jnp.allclose(out_bf16, ref, atol=1e-1, rtol=1e-1), "bf16 mismatch"

    # ---- test 2: exercise the 3-D grid (multi M / Cout / K blocks) --------
    C_in2, C_out2, r2 = 256, 256, 4
    k2 = jax.random.split(key, 4)
    x2 = jax.random.normal(k2[0], (Bsz, seq, C_in2), dtype=jnp.float32)
    w2 = jax.random.normal(k2[1], (C_out2, C_in2), dtype=jnp.float32) * 0.05
    b2 = jax.random.normal(k2[2], (C_out2,), dtype=jnp.float32) * 0.01
    a2 = jax.random.normal(k2[3], (r2, C_in2), dtype=jnp.float32) * 0.05
    bB2 = jax.random.normal(k2[0], (C_out2, r2), dtype=jnp.float32) * 0.05

    ref2 = (x2 @ w2.T + b2) + (x2 @ a2.T) @ bB2.T * (lora_alpha / r2)
    params2 = prepare_stitching_params(w2, b2, a2, bB2, lora_alpha,
                                       compute_dtype=jnp.float32)
    # Force tiny tiles so grid = (2, 2, 2): exercises K accumulator
    # init/finalize and the multi-block parallel axes.
    out2 = jax.block_until_ready(
        stitching_layer_fwd(x2, params2, tm=8, tn=128, tk=128))
    assert out2.shape == (Bsz, seq, C_out2)
    assert jnp.allclose(out2, ref2, atol=1e-4, rtol=1e-4), "K-tiled mismatch"

    print("KERNEL_OK")
</pallas_src>

<mosaic_0001>
module attributes {stable_mosaic.version = 11 : i64} {
  func.func @_linear_bias_kernel(%arg0: i32, %arg1: i32, %arg2: i32, %arg3: memref<16x128xf32, #tpu.memory_space<vmem>>, %arg4: memref<128x128xf32, #tpu.memory_space<vmem>>, %arg5: memref<1x128xf32, #tpu.memory_space<vmem>>, %arg6: memref<16x128xf32, #tpu.memory_space<vmem>>, %arg7: memref<16x128xf32, #tpu.memory_space<vmem>>) attributes {dimension_semantics = [#tpu.dimension_semantics<parallel>, #tpu.dimension_semantics<parallel>, #tpu.dimension_semantics<arbitrary>], iteration_bounds = array<i64: 1, 1, 1>, scalar_prefetch = 0 : i64, scratch_operands = 1 : i64, tpu.core_type = #tpu.core_type<tc>, window_params = [{transform_indices = @transform_0, window_bounds = array<i64: 16, 128>}, {transform_indices = @transform_1, window_bounds = array<i64: 128, 128>}, {transform_indices = @transform_2, window_bounds = array<i64: 1, 128>}, {transform_indices = @transform_3, window_bounds = array<i64: 16, 128>}]} {
    %c0_i32 = arith.constant 0 : i32
    %0 = arith.cmpi eq, %arg2, %c0_i32 : i32
    %1 = arith.extui %0 : i1 to i32
    %c0_i32_0 = arith.constant 0 : i32
    %2 = arith.cmpi ne, %1, %c0_i32_0 : i32
    scf.if %2 {
      %cst_10 = arith.constant 0.000000e+00 : f32
      %12 = vector.broadcast %cst_10 : f32 to vector<16x128xf32>
      %c0_11 = arith.constant 0 : index
      %c0_12 = arith.constant 0 : index
      %13 = vector.load %arg7[%c0_11, %c0_12] : memref<16x128xf32, #tpu.memory_space<vmem>>, vector<16x128xf32>
      tpu.vector_store %arg7[%c0_11, %c0_12], %12 {strides = array<i32>} : memref<16x128xf32, #tpu.memory_space<vmem>>, vector<16x128xf32>,
    } else {
    }
    %c0 = arith.constant 0 : index
    %c0_1 = arith.constant 0 : index
    %3 = vector.load %arg7[%c0, %c0_1] : memref<16x128xf32, #tpu.memory_space<vmem>>, vector<16x128xf32>
    %c0_2 = arith.constant 0 : index
    %c0_3 = arith.constant 0 : index
    %4 = vector.load %arg3[%c0_2, %c0_3] : memref<16x128xf32, #tpu.memory_space<vmem>>, vector<16x128xf32>
    %c0_4 = arith.constant 0 : index
    %c0_5 = arith.constant 0 : index
    %5 = vector.load %arg4[%c0_4, %c0_5] : memref<128x128xf32, #tpu.memory_space<vmem>>, vector<128x128xf32>
    %cst = arith.constant dense<0.000000e+00> : vector<16x128xf32>
    %6 = tpu.matmul %4, %5, %cst {dimension_numbers = #tpu.dot_dimension_numbers<[1], [0], [0], [1], [0, 0, 1, 1], [], []>} : vector<16x128xf32>, vector<128x128xf32>, vector<16x128xf32> -> vector<16x128xf32>
    %7 = arith.addf %3, %6 : vector<16x128xf32>
    %c0_6 = arith.constant 0 : index
    %c0_7 = arith.constant 0 : index
    %8 = vector.load %arg7[%c0_6, %c0_7] : memref<16x128xf32, #tpu.memory_space<vmem>>, vector<16x128xf32>
    tpu.vector_store %arg7[%c0_6, %c0_7], %7 {strides = array<i32>} : memref<16x128xf32, #tpu.memory_space<vmem>>, vector<16x128xf32>,
    %c0_i32_8 = arith.constant 0 : i32
    %9 = arith.cmpi eq, %arg2, %c0_i32_8 : i32
    %10 = arith.extui %9 : i1 to i32
    %c0_i32_9 = arith.constant 0 : i32
    %11 = arith.cmpi ne, %10, %c0_i32_9 : i32
    scf.if %11 {
      %c0_10 = arith.constant 0 : index
      %c0_11 = arith.constant 0 : index
      %12 = vector.load %arg7[%c0_10, %c0_11] : memref<16x128xf32, #tpu.memory_space<vmem>>, vector<16x128xf32>
      %c0_12 = arith.constant 0 : index
      %c0_13 = arith.constant 0 : index
      %13 = vector.load %arg5[%c0_12, %c0_13] : memref<1x128xf32, #tpu.memory_space<vmem>>, vector<1x128xf32>
      %14 = vector.broadcast %13 : vector<1x128xf32> to vector<16x128xf32>
      %15 = arith.addf %12, %14 : vector<16x128xf32>
      %c0_14 = arith.constant 0 : index
      %c0_15 = arith.constant 0 : index
      %16 = vector.load %arg6[%c0_14, %c0_15] : memref<16x128xf32, #tpu.memory_space<vmem>>, vector<16x128xf32>
      tpu.vector_store %arg6[%c0_14, %c0_15], %15 {strides = array<i32>} : memref<16x128xf32, #tpu.memory_space<vmem>>, vector<16x128xf32>,
    } else {
    }
    return
  }
  func.func @transform_0(%arg0: i32, %arg1: i32, %arg2: i32) -> (i32, i32) {
    %c0_i32 = arith.constant 0 : i32
    return %arg1, %arg2 : i32, i32
  }
  func.func @transform_1(%arg0: i32, %arg1: i32, %arg2: i32) -> (i32, i32) {
    %c0_i32 = arith.constant 0 : i32
    return %arg2, %arg0 : i32, i32
  }
  func.func @transform_2(%arg0: i32, %arg1: i32, %arg2: i32) -> (i32, i32) {
    %c0_i32 = arith.constant 0 : i32
    %c0_i32_0 = arith.constant 0 : i32
    return %c0_i32, %arg0 : i32, i32
  }
  func.func @transform_3(%arg0: i32, %arg1: i32, %arg2: i32) -> (i32, i32) {
    %c0_i32 = arith.constant 0 : i32
    return %arg1, %arg0 : i32, i32
  }
}

</mosaic_0001>

<llo_original>
// kernel: tpu_custom_call.1
$region0: #{tpu_custom_call.1}
  #allocation0 [shape = 'u32[]', space=smem, size = 0x4, offset = 0x4, fixed_abs, tag = 'smem constant byte address 0x4 - core index']
  #allocation1 [shape = 'u32[72,128]{1,0:T(1,128)}', space=vmem, size = 0x9000, scoped, tag = 'internal scratch']
  #allocation2 [shape = 'f32[16,128]{1,0:T(8,128)}', space=vmem, size = 0x2000, scoped, tag = 'scratch operand']
  %s0 = inlined_call_operand.hbm [shape: f32[16,128], index: 0, kind: input, shape index: {}]
  %s1 = inlined_call_operand.hbm [shape: f32[128,128], index: 1, kind: input, shape index: {}]
  %s2 = inlined_call_operand.vmem [shape: f32[1,128], index: 2, kind: input, shape index: {}]
  %s3 = inlined_call_operand.hbm [shape: f32[16,128], index: 3, kind: output, shape index: {}]
  %s4 = sld [smem:[#allocation0]]
  $region38: #{tpu_custom_call.1} parent=0
    _
  %s6 = ssub.s32 1, %s4
  %s7 = scalar_select 0, %s6, %s4
  $region1: #{tpu_custom_call.1} parent=0
    #allocation3 [shape = 'u8[8192]{0}', space=vmem, size = 0x2000, scoped, tag = 'input window, operand 0, single buffered']
    #allocation4 [shape = 's32[1]{0}', space=sflag, size = 0x4, scoped, tag = 'scoped memory for tpu_custom_call.1']
    #allocation5 [shape = 's32[1]{0}', space=sflag, size = 0x4, scoped, tag = 'scoped memory for tpu_custom_call.1']
    #allocation6 [shape = 'u8[65536]{0}', space=vmem, size = 0x10000, scoped, tag = 'input window, operand 1, single buffered']
    #allocation7 [shape = 's32[1]{0}', space=sflag, size = 0x4, scoped, tag = 'scoped memory for tpu_custom_call.1']
    #allocation8 [shape = 'u8[8192]{0}', space=vmem, size = 0x2000, scoped, tag = 'output window, operand 0, single buffered']
    %8 = vsyncpa [#allocation4], 0
    %9 = vsyncpa [#allocation7], 0
    %10 = vsyncpa [#allocation5], 0
    // Predicated region
    $region2: #{tpu_custom_call.1} parent=1 // pred_check
      _
    $region3: #{tpu_custom_call.1} parent=1 // pred_check_branch
      %12 = sbr.rel (0) target = $region5
    $region4: #{tpu_custom_call.1} parent=1 // pred_region
      %14 = vsyncadd [#allocation4], 0
      %s15 = sshll.u32 %s0, 4
      %s16 = int_to_ptr.hbm [resolvable:$true] %s15
      %s17 = sshll.u32 [#allocation3], 4
      %s18 = int_to_ptr.vmem [resolvable:$true] %s17
      %23 = dma.hbm_to_vmem [thread:$0]  %s16, 256, %s18, [#allocation4], 128, 128, 8
    $region5: #{tpu_custom_call.1} parent=1 // pred_fallthru
      _
    // Predicated region
    $region6: #{tpu_custom_call.1} parent=1 // pred_check
      _
    $region7: #{tpu_custom_call.1} parent=1 // pred_check_branch
      %25 = sbr.rel (0) target = $region9
    $region8: #{tpu_custom_call.1} parent=1 // pred_region
      %27 = vsyncadd [#allocation7], 0
      %s28 = sshll.u32 %s1, 4
      %s29 = int_to_ptr.hbm [resolvable:$true] %s28
      %s30 = sshll.u32 [#allocation6], 4
      %s31 = int_to_ptr.vmem [resolvable:$true] %s30
      %36 = dma.hbm_to_vmem [thread:$0]  %s29, 2048, %s31, [#allocation7], 128, 128, 8
    $region9: #{tpu_custom_call.1} parent=1 // pred_fallthru
      _
    // Predicated region
    $region10: #{tpu_custom_call.1} parent=1 // pred_check
      _
    $region11: #{tpu_custom_call.1} parent=1 // pred_check_branch
      %38 = sbr.rel (0) target = $region13
    $region12: #{tpu_custom_call.1} parent=1 // pred_region
      _
    $region13: #{tpu_custom_call.1} parent=1 // pred_fallthru
      _
    // Predicated region
    $region14: #{tpu_custom_call.1} parent=1 // pred_check
      _
    $region15: #{tpu_custom_call.1} parent=1 // pred_check_branch
      %40 = sbr.rel (0) target = $region17
    $region16: #{tpu_custom_call.1} parent=1 // pred_region
      %42 = dma.done [#allocation4], 256
    $region17: #{tpu_custom_call.1} parent=1 // pred_fallthru
      _
    // Predicated region
    $region18: #{tpu_custom_call.1} parent=1 // pred_check
      _
    $region19: #{tpu_custom_call.1} parent=1 // pred_check_branch
      %44 = sbr.rel (0) target = $region21
    $region20: #{tpu_custom_call.1} parent=1 // pred_region
      %46 = dma.done [#allocation7], 2048
    $region21: #{tpu_custom_call.1} parent=1 // pred_fallthru
      _
    %p47 = scmp.eq.s32.totalorder 0, 0
    // Predicated region
    $region22: #{tpu_custom_call.1} parent=1 // pred_check
      %p48 = pneg %p47
    $region23: #{tpu_custom_call.1} parent=1 // pred_check_branch
      %50 = sbr.rel (%p48) target = $region25
    $region24: #{tpu_custom_call.1} parent=1 // pred_region
      %51 = vst [vmem:[#allocation2] sm:$0xff] 0.0
      %52 = vst [vmem:[#allocation2 + $0x8] sm:$0xff] 0.0
    $region25: #{tpu_custom_call.1} parent=1 // pred_fallthru
      _
    %v53 = vld [vmem:[#allocation2] sm:$0xff]
    %v54 = vld [vmem:[#allocation2 + $0x8] sm:$0xff]
    %v55 = vld [vmem:[#allocation3] sm:$0xff]
    %v56 = vld [vmem:[#allocation3 + $0x8] sm:$0xff]
    %v57 = vld [vmem:[#allocation6] sm:$0xff]
    %v58 = vld [vmem:[#allocation6 + $0x8] sm:$0xff]
    %v59 = vld [vmem:[#allocation6 + $0x10] sm:$0xff]
    %v60 = vld [vmem:[#allocation6 + $0x18] sm:$0xff]
    %v61 = vld [vmem:[#allocation6 + $0x20] sm:$0xff]
    %v62 = vld [vmem:[#allocation6 + $0x28] sm:$0xff]
    %v63 = vld [vmem:[#allocation6 + $0x30] sm:$0xff]
    %v64 = vld [vmem:[#allocation6 + $0x38] sm:$0xff]
    %v65 = vld [vmem:[#allocation6 + $0x40] sm:$0xff]
    %v66 = vld [vmem:[#allocation6 + $0x48] sm:$0xff]
    %v67 = vld [vmem:[#allocation6 + $0x50] sm:$0xff]
    %v68 = vld [vmem:[#allocation6 + $0x58] sm:$0xff]
    %v69 = vld [vmem:[#allocation6 + $0x60] sm:$0xff]
    %v70 = vld [vmem:[#allocation6 + $0x68] sm:$0xff]
    %v71 = vld [vmem:[#allocation6 + $0x70] sm:$0xff]
    %v72 = vld [vmem:[#allocation6 + $0x78] sm:$0xff]
    %73 = vmatpush.msra.mxu0 %v72
    %74 = vmatpush.msra.mxu0 %v71
    %75 = vmatpush.msra.mxu0 %v70
    %76 = vmatpush.msra.mxu0 %v69
    %77 = vmatpush.msra.mxu0 %v68
    %78 = vmatpush.msra.mxu0 %v67
    %79 = vmatpush.msra.mxu0 %v66
    %80 = vmatpush.msra.mxu0 %v65
    %81 = vmatpush.msra.mxu0 %v64
    %82 = vmatpush.msra.mxu0 %v63
    %83 = vmatpush.msra.mxu0 %v62
    %84 = vmatpush.msra.mxu0 %v61
    %85 = vmatpush.msra.mxu0 %v60
    %86 = vmatpush.msra.mxu0 %v59
    %87 = vmatpush.msra.mxu0 %v58
    %88 = vmatpush.msra.mxu0 %v57
    %89 = vmatmul.f32.gmra.mxu0 %v55
    %v90 = vpop.f32.mrf.mxu0
    %v91 = vadd.f32 0.0, %v90
    %92 = vmatmul.f32.gmra.mxu0 %v56
    %v93 = vpop.f32.mrf.mxu0
    %v94 = vadd.f32 0.0, %v93
    %95 = vdwg.mxu0
    %v96 = vadd.f32 %v53, %v91
    %v97 = vadd.f32 %v54, %v94
    %98 = vst [vmem:[#allocation2] sm:$0xff] %v96
    %99 = vst [vmem:[#allocation2 + $0x8] sm:$0xff] %v97
    // Predicated region
    $region26: #{tpu_custom_call.1} parent=1 // pred_check
      %p100 = pneg %p47
    $region27: #{tpu_custom_call.1} parent=1 // pred_check_branch
      %102 = sbr.rel (%p100) target = $region29
    $region28: #{tpu_custom_call.1} parent=1 // pred_region
      %v103 = vld [vmem:[#allocation2] sm:$0xff]
      %v104 = vld [vmem:[#allocation2 + $0x8] sm:$0xff]
      %v105 = vld [vmem:[%s2] sm:$0x1]
      %v107 = vperm.slane %v105, 0
      %v109 = vadd.f32 %v103, %v107
      %v110 = vadd.f32 %v104, %v107
      %111 = vst [vmem:[#allocation8] sm:$0xff] %v109
      %112 = vst [vmem:[#allocation8 + $0x8] sm:$0xff] %v110
    $region29: #{tpu_custom_call.1} parent=1 // pred_fallthru
      _
    // Predicated region
    $region30: #{tpu_custom_call.1} parent=1 // pred_check
      _
    $region31: #{tpu_custom_call.1} parent=1 // pred_check_branch
      %114 = sbr.rel (0) target = $region33
    $region32: #{tpu_custom_call.1} parent=1 // pred_region
      %116 = vsyncadd [#allocation5], 0
      %s117 = sshll.u32 [#allocation8], 4
      %s118 = int_to_ptr.vmem [resolvable:$true] %s117
      %s119 = sshll.u32 %s3, 4
      %s120 = int_to_ptr.hbm [resolvable:$true] %s119
      %125 = dma.vmem_to_hbm [thread:$0]  %s118, 256, %s120, [#allocation5], 128, 128, 8
    $region33: #{tpu_custom_call.1} parent=1 // pred_fallthru
      _
    // Predicated region
    $region34: #{tpu_custom_call.1} parent=1 // pred_check
      _
    $region35: #{tpu_custom_call.1} parent=1 // pred_check_branch
      %127 = sbr.rel (0) target = $region37
    $region36: #{tpu_custom_call.1} parent=1 // pred_region
      %129 = dma.done [#allocation5], 256
    $region37: #{tpu_custom_call.1} parent=1 // pred_fallthru
      _
    %130 = vsyncpa [#allocation4], 1
    %131 = vsyncpa [#allocation7], 1
    %132 = vsyncpa [#allocation5], 1

</llo_original>
